<compile_context>
chip_gen: v5e
topology: v5e:2x2
jax: 0.10.0
libtpu: 0.0.40
codegen_flags: <defaults>
</compile_context>

<pallas_src>
import functools

import jax
import jax.numpy as jnp
from jax import lax
from jax.experimental import pallas as pl
from jax.experimental.pallas import tpu as pltpu


def _device_defaults():
    """Generation-specific scoped-VMEM budget and default row tile."""
    try:
        kind = jax.devices()[0].device_kind.lower()
    except Exception:  # pragma: no cover - defensive
        kind = ""
    if "v7" in kind:
        # v7x: 64 MiB physical VMEM per TensorCore -> stay well under it.
        return 48 * 1024 * 1024, 256
    if any(g in kind for g in ("v4", "v5", "v6")):
        # 128 MiB physical VMEM; 512-row tiles reach ~85% of HBM roofline.
        return 96 * 1024 * 1024, 512
    # Unknown device: be conservative.
    return 48 * 1024 * 1024, 256


_VMEM_LIMIT_BYTES, _DEFAULT_ROW_TILE = _device_defaults()


def _compiler_params(semantics):
    return pltpu.CompilerParams(
        dimension_semantics=semantics,
        vmem_limit_bytes=_VMEM_LIMIT_BYTES,
    )


def _pick_tile(dim, target, align=16):
    """Largest divisor of `dim` that is <= target and a multiple of `align`.

    Falls back to the full dimension (always a legal block shape) rather than
    ever returning a tile that violates the (8/16, 128) block constraint.
    """
    if dim <= target:
        return dim
    for cand in range(min(target, dim), 0, -1):
        if dim % cand == 0 and cand % align == 0:
            return cand
    return dim


# ----------------------------- kernels ---------------------------------------


def ln_qproj_kernel(x_ref, g_ref, b_ref, w_ref, o_ref, *, eps):
    """Fused LayerNorm + all-heads Q projection.

    One (tl, D) @ (D, H*dk) matmul per row tile; the output block's last dim is
    H*dk (lane-dense).  LN statistics in f32; gamma/beta already include the
    1/sqrt(dim_key) attention scale.
    """
    x = x_ref[0].astype(jnp.float32)                       # (tl, D)
    mean = jnp.mean(x, axis=-1, keepdims=True)
    var = jnp.mean(jnp.square(x - mean), axis=-1, keepdims=True)
    xn = (x - mean) * lax.rsqrt(var + eps)
    xn = (xn * g_ref[...] + b_ref[...]).astype(w_ref.dtype)
    o_ref[0] = jnp.dot(
        xn, w_ref[...], preferred_element_type=jnp.float32
    ).astype(o_ref.dtype)


def proj_kernel(x_ref, w_ref, o_ref):
    """All-heads K/V projection: (tl, D) @ (D, H*d) -> lane-dense output."""
    o_ref[0] = jnp.dot(
        x_ref[0].astype(w_ref.dtype), w_ref[...],
        preferred_element_type=jnp.float32,
    ).astype(o_ref.dtype)


def attention_kernel(q_ref, k_ref, v_ref, ctx_ref, *maybe_attn_ref,
                     heads, dim_key, dim_value):
    """Scaled dot-product attention for one (batch, q-tile) step, all heads.

    Inputs are lane-dense (tq, H*dk) / (Lk, H*dk) / (Lk, H*dv); heads are
    split with static lane slices.  Softmax in f32 with an exact reciprocal
    (the attention map is a user-visible output).  The per-head contexts are
    concatenated back into a lane-dense (tq, H*dv) slab for a single store.
    The scores dot contracts the last dim of both operands (no materialized
    k.T).
    """
    q = q_ref[0]                                           # (tq, H*dk)
    k = k_ref[0]                                           # (Lk, H*dk)
    v = v_ref[0]                                           # (Lk, H*dv)

    ctx_parts = []
    for h in range(heads):
        qh = q[:, h * dim_key:(h + 1) * dim_key]           # (tq, dk)
        kh = k[:, h * dim_key:(h + 1) * dim_key]           # (Lk, dk)
        vh = v[:, h * dim_value:(h + 1) * dim_value]       # (Lk, dv)

        s = lax.dot_general(qh, kh, (((1,), (1,)), ((), ())),
                            preferred_element_type=jnp.float32)  # (tq, Lk)
        m = jnp.max(s, axis=-1, keepdims=True)
        e = jnp.exp(s - m)
        denom = jnp.sum(e, axis=-1, keepdims=True)
        p = e * pl.reciprocal(denom, approx=False)

        if maybe_attn_ref:
            maybe_attn_ref[0][0, h] = p.astype(maybe_attn_ref[0].dtype)

        ctx_parts.append(jnp.dot(p.astype(vh.dtype), vh,
                                 preferred_element_type=jnp.float32))

    ctx = jnp.concatenate(ctx_parts, axis=-1)              # (tq, H*dv)
    ctx_ref[0] = ctx.astype(ctx_ref.dtype)


def out_proj_kernel(ctx_ref, w_ref, r_ref, o_ref):
    """Output projection + fused residual add as a single K=H*dv matmul."""
    y = jnp.dot(ctx_ref[0], w_ref[...], preferred_element_type=jnp.float32)
    o_ref[0] = (y + r_ref[0].astype(jnp.float32)).astype(o_ref.dtype)


# ----------------------------- wrappers ---------------------------------------


def layernorm_q_projection(x, gamma, beta, w_q, *, eps, out_dtype,
                           row_tile=None):
    B, L, D = x.shape
    HK = w_q.shape[1]
    tl = _pick_tile(L, row_tile or _DEFAULT_ROW_TILE, 16)
    return pl.pallas_call(
        functools.partial(ln_qproj_kernel, eps=eps),
        out_shape=jax.ShapeDtypeStruct((B, L, HK), out_dtype),
        grid=(B, L // tl),
        in_specs=[
            pl.BlockSpec((1, tl, D), lambda b, i: (b, i, 0)),
            pl.BlockSpec((1, D), lambda b, i: (0, 0)),
            pl.BlockSpec((1, D), lambda b, i: (0, 0)),
            pl.BlockSpec((D, HK), lambda b, i: (0, 0)),
        ],
        out_specs=pl.BlockSpec((1, tl, HK), lambda b, i: (b, i, 0)),
        compiler_params=_compiler_params(("parallel", "parallel")),
    )(x, gamma.reshape(1, D), beta.reshape(1, D), w_q)


def head_projection(x, w, *, out_dtype, row_tile=None):
    B, L, D = x.shape
    Hd = w.shape[1]
    tl = _pick_tile(L, row_tile or _DEFAULT_ROW_TILE, 16)
    return pl.pallas_call(
        proj_kernel,
        out_shape=jax.ShapeDtypeStruct((B, L, Hd), out_dtype),
        grid=(B, L // tl),
        in_specs=[
            pl.BlockSpec((1, tl, D), lambda b, i: (b, i, 0)),
            pl.BlockSpec((D, Hd), lambda b, i: (0, 0)),
        ],
        out_specs=pl.BlockSpec((1, tl, Hd), lambda b, i: (b, i, 0)),
        compiler_params=_compiler_params(("parallel", "parallel")),
    )(x, w)


def multi_head_sdpa(q, k, v, *, heads, dim_key, dim_value,
                    return_attention=True, attn_dtype=jnp.bfloat16,
                    q_tile=None):
    """q: (B, Lq, H*dk), k: (B, Lk, H*dk), v: (B, Lk, H*dv)."""
    B, Lq, HK = q.shape
    Lk = k.shape[1]
    HV = v.shape[2]
    assert k.shape[1] == v.shape[1], "key/value lengths must match"
    tq = _pick_tile(Lq, q_tile or _DEFAULT_ROW_TILE, 16)

    out_shapes = [jax.ShapeDtypeStruct((B, Lq, HV), q.dtype)]
    out_specs = [pl.BlockSpec((1, tq, HV), lambda b, i: (b, i, 0))]
    if return_attention:
        out_shapes.append(
            jax.ShapeDtypeStruct((B, heads, Lq, Lk), attn_dtype))
        out_specs.append(
            pl.BlockSpec((1, heads, tq, Lk), lambda b, i: (b, 0, i, 0)))

    outs = pl.pallas_call(
        functools.partial(attention_kernel, heads=heads, dim_key=dim_key,
                          dim_value=dim_value),
        out_shape=tuple(out_shapes),
        grid=(B, Lq // tq),
        in_specs=[
            pl.BlockSpec((1, tq, HK), lambda b, i: (b, i, 0)),
            pl.BlockSpec((1, Lk, HK), lambda b, i: (b, 0, 0)),
            pl.BlockSpec((1, Lk, HV), lambda b, i: (b, 0, 0)),
        ],
        out_specs=tuple(out_specs),
        compiler_params=_compiler_params(("parallel", "parallel")),
    )(q, k, v)
    ctx = outs[0]
    attn = outs[1] if return_attention else None
    return ctx, attn


def output_projection_residual(ctx, w_u, residual, *, out_dtype,
                               row_tile=None, col_tile=512):
    B, L, HV = ctx.shape
    D = w_u.shape[1]
    tl = _pick_tile(L, row_tile or _DEFAULT_ROW_TILE, 16)
    tn = _pick_tile(D, col_tile, 128)
    return pl.pallas_call(
        out_proj_kernel,
        out_shape=jax.ShapeDtypeStruct((B, L, D), out_dtype),
        grid=(B, L // tl, D // tn),
        in_specs=[
            pl.BlockSpec((1, tl, HV), lambda b, i, j: (b, i, 0)),
            pl.BlockSpec((HV, tn), lambda b, i, j: (0, j)),
            pl.BlockSpec((1, tl, tn), lambda b, i, j: (b, i, j)),
        ],
        out_specs=pl.BlockSpec((1, tl, tn), lambda b, i, j: (b, i, j)),
        compiler_params=_compiler_params(("parallel", "parallel", "parallel")),
    )(ctx, w_u, residual)


def prepare_params(raw, compute_dtype=jnp.bfloat16):
    """One-time parameter layout / dtype prep (done at model init)."""
    H, dk, dv = raw["heads"], raw["dim_key"], raw["dim_value"]
    scale = 1.0 / float(dk) ** 0.5
    return {
        "heads": H, "dim_key": dk, "dim_value": dv,
        # 1/sqrt(dk) folded into the LN affine (LN output only feeds Q).
        "ln_gamma": raw["ln_gamma"].astype(jnp.float32) * scale,
        "ln_beta": raw["ln_beta"].astype(jnp.float32) * scale,
        # Flat [in, out] weights -> all-heads-in-one matmuls, lane-dense outputs.
        "w_q": raw["w_q"].astype(compute_dtype),
        "w_k": raw["w_k"].astype(compute_dtype),
        "w_v": raw["w_v"].astype(compute_dtype),
        "w_u": raw["w_u"].astype(compute_dtype),
    }


def multi_head_attention(params, query, key, value, mask=None, *,
                         return_attention=True, attn_dtype=jnp.bfloat16):
    """Forward pass matching MultiHeadAttention.forward (eval mode)."""
    assert mask is None, "mask path not supported by this Pallas kernel"
    compute_dtype = params["w_q"].dtype

    # Fused LayerNorm + Q projection (single pass over the query activation).
    q = layernorm_q_projection(query, params["ln_gamma"], params["ln_beta"],
                               params["w_q"], eps=1e-6, out_dtype=compute_dtype)
    k = head_projection(key, params["w_k"], out_dtype=compute_dtype)
    v = head_projection(value, params["w_v"], out_dtype=compute_dtype)

    # Scaled dot-product attention, all heads of one (batch, q-tile) per step.
    ctx, attn = multi_head_sdpa(
        q, k, v, heads=params["heads"], dim_key=params["dim_key"],
        dim_value=params["dim_value"], return_attention=return_attention,
        attn_dtype=attn_dtype)

    # Output projection fused with the residual add (single K=H*dv matmul).
    out = output_projection_residual(ctx, params["w_u"], query,
                                     out_dtype=query.dtype)
    return out, attn


# ----------------------------- pure-JAX reference -----------------------------


def reference(raw, query, key, value):
    H, dk, dv = raw["heads"], raw["dim_key"], raw["dim_value"]
    B, Lq, _ = query.shape
    Lk, Lv = key.shape[1], value.shape[1]
    residual = query
    mean = jnp.mean(query, axis=-1, keepdims=True)
    var = jnp.mean(jnp.square(query - mean), axis=-1, keepdims=True)
    qn = (query - mean) / jnp.sqrt(var + 1e-6) * raw["ln_gamma"] + raw["ln_beta"]
    q = (qn @ raw["w_q"]).reshape(B, Lq, H, dk).transpose(0, 2, 1, 3)
    k = (key @ raw["w_k"]).reshape(B, Lk, H, dk).transpose(0, 2, 1, 3)
    v = (value @ raw["w_v"]).reshape(B, Lv, H, dv).transpose(0, 2, 1, 3)
    s = jnp.einsum("bhqd,bhkd->bhqk", q, k) / float(dk) ** 0.5
    p = jax.nn.softmax(s, axis=-1)
    o = jnp.einsum("bhqk,bhkd->bhqd", p, v)
    o = o.transpose(0, 2, 1, 3).reshape(B, Lq, H * dv)
    return o @ raw["w_u"] + residual, p


if __name__ == "__main__":
    heads, dim_model, dim_key, dim_value = 4, 32, 8, 8
    batch, seq = 2, 8

    root = jax.random.PRNGKey(0)
    ks = jax.random.split(root, 7)

    def init_w(k, shape, fan_in):
        bound = 1.0 / (fan_in ** 0.5)
        return jax.random.uniform(k, shape, jnp.float32, -bound, bound)

    raw_params = {
        "heads": heads, "dim_key": dim_key, "dim_value": dim_value,
        # weights stored as [in, out] (i.e. PyTorch weight transposed)
        "w_q": init_w(ks[0], (dim_model, heads * dim_key), dim_model),
        "w_k": init_w(ks[1], (dim_model, heads * dim_key), dim_model),
        "w_v": init_w(ks[2], (dim_model, heads * dim_value), dim_model),
        "w_u": init_w(ks[3], (heads * dim_value, dim_model), heads * dim_value),
        "ln_gamma": jnp.ones((dim_model,), jnp.float32),
        "ln_beta": jnp.zeros((dim_model,), jnp.float32),
    }

    query = jax.random.normal(ks[4], (batch, seq, dim_model), jnp.float32)
    key_in = jax.random.normal(ks[5], (batch, seq, dim_model), jnp.float32)
    value = jax.random.normal(ks[6], (batch, seq, dim_model), jnp.float32)

    params = prepare_params(raw_params, compute_dtype=jnp.bfloat16)
    out, attn = multi_head_attention(params, query, key_in, value)
    out = jax.block_until_ready(out)
    attn = jax.block_until_ready(attn)

    ref_out, ref_attn = reference(raw_params, query, key_in, value)
    assert out.shape == (batch, seq, dim_model)
    assert attn.shape == (batch, heads, seq, seq)
    # bf16 MXU operands + bf16 attention writeback -> loosened tolerances.
    assert jnp.allclose(out, ref_out, atol=5e-2, rtol=5e-2), (
        float(jnp.max(jnp.abs(out - ref_out))))
    assert jnp.allclose(attn.astype(jnp.float32), ref_attn,
                        atol=5e-2, rtol=5e-2), (
        float(jnp.max(jnp.abs(attn.astype(jnp.float32) - ref_attn))))

    print("KERNEL_OK")
</pallas_src>

<mosaic_0001>
module attributes {stable_mosaic.version = 11 : i64} {
  func.func @ln_qproj_kernel(%arg0: i32, %arg1: i32, %arg2: memref<1x8x32xf32, #tpu.memory_space<vmem>>, %arg3: memref<1x32xf32, #tpu.memory_space<vmem>>, %arg4: memref<1x32xf32, #tpu.memory_space<vmem>>, %arg5: memref<32x32xbf16, #tpu.memory_space<vmem>>, %arg6: memref<1x8x32xbf16, #tpu.memory_space<vmem>>) attributes {dimension_semantics = [#tpu.dimension_semantics<parallel>, #tpu.dimension_semantics<parallel>], iteration_bounds = array<i64: 2, 1>, scalar_prefetch = 0 : i64, scratch_operands = 0 : i64, tpu.core_type = #tpu.core_type<tc>, window_params = [{transform_indices = @transform_0, window_bounds = array<i64: 1, 8, 32>}, {pipeline_mode = #tpu.pipeline_mode<synchronous>, transform_indices = @transform_1, window_bounds = array<i64: 1, 32>}, {pipeline_mode = #tpu.pipeline_mode<synchronous>, transform_indices = @transform_2, window_bounds = array<i64: 1, 32>}, {pipeline_mode = #tpu.pipeline_mode<synchronous>, transform_indices = @transform_3, window_bounds = array<i64: 32, 32>}, {transform_indices = @transform_4, window_bounds = array<i64: 1, 8, 32>}]} {
    %c0 = arith.constant 0 : index
    %c0_0 = arith.constant 0 : index
    %c0_1 = arith.constant 0 : index
    %0 = vector.load %arg2[%c0, %c0_0, %c0_1] : memref<1x8x32xf32, #tpu.memory_space<vmem>>, vector<1x8x32xf32>
    %1 = vector.shape_cast %0 : vector<1x8x32xf32> to vector<8x32xf32>
    %cst = arith.constant dense<0.000000e+00> : vector<8xf32>
    %2 = vector.multi_reduction <add>, %1, %cst [1] : vector<8x32xf32> to vector<8xf32>
    %3 = vector.shape_cast %2 : vector<8xf32> to vector<8x1xf32>
    %cst_2 = arith.constant 3.200000e+01 : f32
    %4 = vector.broadcast %cst_2 : f32 to vector<8x1xf32>
    %5 = arith.divf %3, %4 : vector<8x1xf32>
    %6 = vector.broadcast %5 : vector<8x1xf32> to vector<8x32xf32>
    %7 = arith.subf %1, %6 : vector<8x32xf32>
    %8 = arith.mulf %7, %7 : vector<8x32xf32>
    %cst_3 = arith.constant dense<0.000000e+00> : vector<8xf32>
    %9 = vector.multi_reduction <add>, %8, %cst_3 [1] : vector<8x32xf32> to vector<8xf32>
    %10 = vector.shape_cast %9 : vector<8xf32> to vector<8x1xf32>
    %cst_4 = arith.constant 3.200000e+01 : f32
    %11 = vector.broadcast %cst_4 : f32 to vector<8x1xf32>
    %12 = arith.divf %10, %11 : vector<8x1xf32>
    %13 = vector.broadcast %5 : vector<8x1xf32> to vector<8x32xf32>
    %14 = arith.subf %1, %13 : vector<8x32xf32>
    %cst_5 = arith.constant 9.99999997E-7 : f32
    %15 = vector.broadcast %cst_5 : f32 to vector<8x1xf32>
    %16 = arith.addf %12, %15 : vector<8x1xf32>
    %17 = math.rsqrt %16 : vector<8x1xf32>
    %18 = vector.broadcast %17 : vector<8x1xf32> to vector<8x32xf32>
    %19 = arith.mulf %14, %18 : vector<8x32xf32>
    %c0_6 = arith.constant 0 : index
    %c0_7 = arith.constant 0 : index
    %20 = vector.load %arg3[%c0_6, %c0_7] : memref<1x32xf32, #tpu.memory_space<vmem>>, vector<1x32xf32>
    %21 = vector.broadcast %20 : vector<1x32xf32> to vector<8x32xf32>
    %22 = arith.mulf %19, %21 : vector<8x32xf32>
    %c0_8 = arith.constant 0 : index
    %c0_9 = arith.constant 0 : index
    %23 = vector.load %arg4[%c0_8, %c0_9] : memref<1x32xf32, #tpu.memory_space<vmem>>, vector<1x32xf32>
    %24 = vector.broadcast %23 : vector<1x32xf32> to vector<8x32xf32>
    %25 = arith.addf %22, %24 : vector<8x32xf32>
    %26 = arith.truncf %25 : vector<8x32xf32> to vector<8x32xbf16>
    %c0_10 = arith.constant 0 : index
    %c0_11 = arith.constant 0 : index
    %27 = vector.load %arg5[%c0_10, %c0_11] : memref<32x32xbf16, #tpu.memory_space<vmem>>, vector<32x32xbf16>
    %cst_12 = arith.constant dense<0.000000e+00> : vector<8x32xf32>
    %28 = tpu.matmul %26, %27, %cst_12 {dimension_numbers = #tpu.dot_dimension_numbers<[1], [0], [0], [1], [0, 0, 1, 1], [], []>} : vector<8x32xbf16>, vector<32x32xbf16>, vector<8x32xf32> -> vector<8x32xf32>
    %29 = arith.truncf %28 : vector<8x32xf32> to vector<8x32xbf16>
    %c0_13 = arith.constant 0 : index
    %c0_14 = arith.constant 0 : index
    %c0_15 = arith.constant 0 : index
    %30 = vector.load %arg6[%c0_13, %c0_14, %c0_15] : memref<1x8x32xbf16, #tpu.memory_space<vmem>>, vector<1x8x32xbf16>
    %31 = vector.shape_cast %30 : vector<1x8x32xbf16> to vector<8x32xbf16>
    %32 = vector.shape_cast %29 : vector<8x32xbf16> to vector<1x8x32xbf16>
    tpu.vector_store %arg6[%c0_13, %c0_14, %c0_15], %32 {strides = array<i32>} : memref<1x8x32xbf16, #tpu.memory_space<vmem>>, vector<1x8x32xbf16>,
    return
  }
  func.func @transform_0(%arg0: i32, %arg1: i32) -> (i32, i32, i32) {
    %c0_i32 = arith.constant 0 : i32
    %c0_i32_0 = arith.constant 0 : i32
    return %arg0, %arg1, %c0_i32 : i32, i32, i32
  }
  func.func @transform_1(%arg0: i32, %arg1: i32) -> (i32, i32) {
    %c0_i32 = arith.constant 0 : i32
    %c0_i32_0 = arith.constant 0 : i32
    %c0_i32_1 = arith.constant 0 : i32
    return %c0_i32, %c0_i32_0 : i32, i32
  }
  func.func @transform_2(%arg0: i32, %arg1: i32) -> (i32, i32) {
    %c0_i32 = arith.constant 0 : i32
    %c0_i32_0 = arith.constant 0 : i32
    %c0_i32_1 = arith.constant 0 : i32
    return %c0_i32, %c0_i32_0 : i32, i32
  }
  func.func @transform_3(%arg0: i32, %arg1: i32) -> (i32, i32) {
    %c0_i32 = arith.constant 0 : i32
    %c0_i32_0 = arith.constant 0 : i32
    %c0_i32_1 = arith.constant 0 : i32
    return %c0_i32, %c0_i32_0 : i32, i32
  }
  func.func @transform_4(%arg0: i32, %arg1: i32) -> (i32, i32, i32) {
    %c0_i32 = arith.constant 0 : i32
    %c0_i32_0 = arith.constant 0 : i32
    return %arg0, %arg1, %c0_i32 : i32, i32, i32
  }
}

</mosaic_0001>

<llo_original>
// kernel: tpu_custom_call.1
$region0: #{tpu_custom_call.1}
  #allocation0 [shape = 'u32[]', space=smem, size = 0x4, offset = 0x4, fixed_abs, tag = 'smem constant byte address 0x4 - core index']
  #allocation1 [shape = 'u32[72,128]{1,0:T(1,128)}', space=vmem, size = 0x9000, scoped, tag = 'internal scratch']
  %s0 = inlined_call_operand.hbm [shape: f32[2,8,32], index: 0, kind: input, shape index: {}]
  %s1 = inlined_call_operand.hbm [shape: f32[1,32], index: 1, kind: input, shape index: {}]
  %s2 = inlined_call_operand.vmem [shape: f32[1,32], index: 2, kind: input, shape index: {}]
  %s3 = inlined_call_operand.hbm [shape: bf16[32,32], index: 3, kind: input, shape index: {}]
  %s4 = inlined_call_operand.hbm [shape: bf16[2,8,32], index: 4, kind: output, shape index: {}]
  %s5 = sld [smem:[#allocation0]]
  $region61: #{tpu_custom_call.1} parent=0
    _
  %s7 = ssub.s32 1, %s5
  %s8 = scalar_select 0, %s7, %s5
  $region1: #{tpu_custom_call.1} parent=0
    #allocation2 [shape = 'u8[8192]{0}', space=vmem, size = 0x2000, scoped, tag = 'input window, operand 0']
    #allocation3 [shape = 's32[2]{0}', space=sflag, size = 0x8, scoped, tag = 'scoped memory for tpu_custom_call.1']
    #allocation4 [shape = 's32[2]{0}', space=sflag, size = 0x8, scoped, tag = 'scoped memory for tpu_custom_call.1']
    #allocation5 [shape = 'u8[512]{0}', space=vmem, size = 0x400, scoped, tag = 'input window, operand 1, single buffered']
    #allocation6 [shape = 's32[1]{0}', space=sflag, size = 0x4, scoped, tag = 'scoped memory for tpu_custom_call.1']
    #allocation7 [shape = 'u8[8192]{0}', space=vmem, size = 0x2000, scoped, tag = 'input window, operand 3, single buffered']
    #allocation8 [shape = 'u8[4096]{0}', space=vmem, size = 0x1000, scoped, tag = 'output window, operand 0']
    %9 = vsyncpa [#allocation3], 0
    %s10 = scalar_lea.sflag [#allocation3], 1
    %11 = vsyncpa %s10, 0
    %12 = vsyncpa [#allocation6], 0
    %13 = vsyncpa [#allocation4], 0
    %s14 = scalar_lea.sflag [#allocation4], 1
    %15 = vsyncpa %s14, 0
    loop: start=0, step=1, limit=4
    $region2: #{tpu_custom_call.1} parent=1 // loop_pre_header
      _
    $region3: #{tpu_custom_call.1} parent=1 // loop_header
      %s17 = sphi 0, %s21
      %p18 = scmp.ge.s32.totalorder %s17, 4
      %s24 = sphi 0, %s36
      %s25 = sphi 0, %s32
      %s26 = sphi 0, %s24
      %s27 = sphi 0, %s25
      %s28 = sphi 0, %s26
      %s29 = sphi 0, %s27
      %s41 = sphi 0, %s43
      %s44 = sphi 0, %s41
      %s45 = sphi 0, %s44
      %s61 = sphi 0, %s45
      %s65 = sphi 0, %s65
      %s67 = sphi 0, %s65
      %s68 = sphi 0, %s67
      %s82 = sphi 0, %s68
      %s86 = sphi 0, %s86
      %s88 = sphi 0, %s86
      %s89 = sphi 0, %s88
      %s103 = sphi 0, %s89
      %s107 = sphi 0, %s107
      %s109 = sphi 0, %s107
      %s110 = sphi 0, %s109
      %s124 = sphi 0, %s110
      %s132 = sphi 0, %s134
      %s135 = sphi 0, %s132
      %s136 = sphi 0, %s135
      %s152 = sphi 0, %s136
    $region4: #{tpu_custom_call.1} parent=1 // loop_header_branch
      %20 = sbr.rel (%p18) target = $region8
    $region5: #{tpu_custom_call.1} parent=1 // loop_body
      %s22 = ssub.s32 %s17, 1
      %s23 = ssub.s32 %s17, 2
      %s30 = sadd.s32 1, %s25
      %p31 = scmp.ge.s32.totalorder %s30, 1
      %s32 = scalar_select %p31, 0, %s30
      %s33 = sadd.s32 1, %s24
      %s34 = scalar_select %p31, %s33, %s24
      %p35 = scmp.ge.s32.totalorder %s34, 2
      %s36 = scalar_select %p35, 0, %s34
      %s37 = ssub.s32 %s24, %s36
      %s38 = ssub.s32 %s25, %s32
      %s39 = sor.u32 %s37, %s38
      %p40 = scmp.eq.s32.totalorder %s39, 0
      %s42 = sadd.s32 %s41, 1
      %s43 = scalar_select %p40, %s41, %s42
      %p46 = pneg %p40
      %p47 = scmp.eq.s32.totalorder %s17, 1
      %p48 = por %p46, %p47
      %p49 = scmp.ne.s32.totalorder %s41, %s44
      %p50 = scmp.eq.s32.totalorder %s17, 0
      %p51 = por %p49, %p50
      %p52 = scmp.ne.s32.totalorder %s41, %s44
      %p53 = scmp.eq.s32.totalorder %s22, 1
      %p54 = por %p52, %p53
      %p55 = scmp.ne.s32.totalorder %s44, %s45
      %p56 = scmp.eq.s32.totalorder %s22, 0
      %p57 = por %p55, %p56
      %p58 = scmp.ne.s32.totalorder %s44, %s45
      %p59 = scmp.eq.s32.totalorder %s23, 1
      %p60 = por %p58, %p59
      %p62 = scmp.ne.s32.totalorder %s45, %s61
      %p63 = scmp.eq.s32.totalorder %s23, 0
      %p64 = por %p62, %p63
      %s66 = sadd.s32 %s65, 1
      %p69 = scmp.eq.s32.totalorder %s17, 1
      %p70 = scmp.ne.s32.totalorder %s65, %s67
      %p71 = scmp.eq.s32.totalorder %s17, 0
      %p72 = por %p70, %p71
      %p73 = scmp.ne.s32.totalorder %s65, %s67
      %p74 = scmp.eq.s32.totalorder %s22, 1
      %p75 = por %p73, %p74
      %p76 = scmp.ne.s32.totalorder %s67, %s68
      %p77 = scmp.eq.s32.totalorder %s22, 0
      %p78 = por %p76, %p77
      %p79 = scmp.ne.s32.totalorder %s67, %s68
      %p80 = scmp.eq.s32.totalorder %s23, 1
      %p81 = por %p79, %p80
      %p83 = scmp.ne.s32.totalorder %s68, %s82
      %p84 = scmp.eq.s32.totalorder %s23, 0
      %p85 = por %p83, %p84
      %s87 = sadd.s32 %s86, 1
      %p90 = scmp.eq.s32.totalorder %s17, 1
      %p91 = scmp.ne.s32.totalorder %s86, %s88
      %p92 = scmp.eq.s32.totalorder %s17, 0
      %p93 = por %p91, %p92
      %p94 = scmp.ne.s32.totalorder %s86, %s88
      %p95 = scmp.eq.s32.totalorder %s22, 1
      %p96 = por %p94, %p95
      %p97 = scmp.ne.s32.totalorder %s88, %s89
      %p98 = scmp.eq.s32.totalorder %s22, 0
      %p99 = por %p97, %p98
      %p100 = scmp.ne.s32.totalorder %s88, %s89
      %p101 = scmp.eq.s32.totalorder %s23, 1
      %p102 = por %p100, %p101
      %p104 = scmp.ne.s32.totalorder %s89, %s103
      %p105 = scmp.eq.s32.totalorder %s23, 0
      %p106 = por %p104, %p105
      %s108 = sadd.s32 %s107, 1
      %p111 = scmp.eq.s32.totalorder %s17, 1
      %p112 = scmp.ne.s32.totalorder %s107, %s109
      %p113 = scmp.eq.s32.totalorder %s17, 0
      %p114 = por %p112, %p113
      %p115 = scmp.ne.s32.totalorder %s107, %s109
      %p116 = scmp.eq.s32.totalorder %s22, 1
      %p117 = por %p115, %p116
      %p118 = scmp.ne.s32.totalorder %s109, %s110
      %p119 = scmp.eq.s32.totalorder %s22, 0
      %p120 = por %p118, %p119
      %p121 = scmp.ne.s32.totalorder %s109, %s110
      %p122 = scmp.eq.s32.totalorder %s23, 1
      %p123 = por %p121, %p122
      %p125 = scmp.ne.s32.totalorder %s110, %s124
      %p126 = scmp.eq.s32.totalorder %s23, 0
      %p127 = por %p125, %p126
      %s128 = ssub.s32 %s24, %s36
      %s129 = ssub.s32 %s25, %s32
      %s130 = sor.u32 %s128, %s129
      %p131 = scmp.eq.s32.totalorder %s130, 0
      %s133 = sadd.s32 %s132, 1
      %s134 = scalar_select %p131, %s132, %s133
      %p137 = pneg %p131
      %p138 = scmp.eq.s32.totalorder %s17, 1
      %p139 = por %p137, %p138
      %p140 = scmp.ne.s32.totalorder %s132, %s135
      %p141 = scmp.eq.s32.totalorder %s17, 0
      %p142 = por %p140, %p141
      %p143 = scmp.ne.s32.totalorder %s132, %s135
      %p144 = scmp.eq.s32.totalorder %s22, 1
      %p145 = por %p143, %p144
      %p146 = scmp.ne.s32.totalorder %s135, %s136
      %p147 = scmp.eq.s32.totalorder %s22, 0
      %p148 = por %p146, %p147
      %p149 = scmp.ne.s32.totalorder %s135, %s136
      %p150 = scmp.eq.s32.totalorder %s23, 1
      %p151 = por %p149, %p150
      %p153 = scmp.ne.s32.totalorder %s136, %s152
      %p154 = scmp.eq.s32.totalorder %s23, 0
      %p155 = por %p153, %p154
      %p156 = scmp.le.s32.totalorder 1, %s17
      %p157 = scmp.lt.s32.totalorder %s17, 3
      %p158 = pnand %p156, %p157
      %p159 = pneg %p158
      // Predicated region
      $region9: #{tpu_custom_call.1} parent=5 // pred_check
        _
      $region10: #{tpu_custom_call.1} parent=5 // pred_check_branch
        %161 = sbr.rel (%p158) target = $region12
      $region11: #{tpu_custom_call.1} parent=5 // pred_region
        %s162 = ssub.s32 %s17, 1
        // Predicated region
        $region13: #{tpu_custom_call.1} parent=11 // pred_check
          %p163 = pneg %p78
        $region14: #{tpu_custom_call.1} parent=11 // pred_check_branch
          %165 = sbr.rel (%p163) target = $region16
        $region15: #{tpu_custom_call.1} parent=11 // pred_region
          %167 = vsyncadd [#allocation6], 0
          %s169 = sshll.u32 %s1, 4
          %s170 = int_to_ptr.hbm [resolvable:$true] %s169
          %s171 = sshll.u32 [#allocation5], 4
          %s172 = int_to_ptr.vmem [resolvable:$true] %s171
          %174 = dma.hbm_to_vmem [thread:$0]  %s170, 16, %s172, [#allocation6]
        $region16: #{tpu_custom_call.1} parent=11 // pred_fallthru
          _
        // Predicated region
        $region17: #{tpu_custom_call.1} parent=11 // pred_check
          %p175 = pneg %p99
        $region18: #{tpu_custom_call.1} parent=11 // pred_check_branch
          %177 = sbr.rel (%p175) target = $region20
        $region19: #{tpu_custom_call.1} parent=11 // pred_region
          _
        $region20: #{tpu_custom_call.1} parent=11 // pred_fallthru
          _
        // Predicated region
        $region21: #{tpu_custom_call.1} parent=11 // pred_check
          %p178 = pneg %p120
        $region22: #{tpu_custom_call.1} parent=11 // pred_check_branch
          %180 = sbr.rel (%p178) target = $region24
        $region23: #{tpu_custom_call.1} parent=11 // pred_region
          %182 = vsyncadd [#allocation6], 0
          %s183 = sshll.u32 %s3, 4
          %s184 = int_to_ptr.hbm [resolvable:$true] %s183
          %s185 = sshll.u32 [#allocation7], 4
          %s186 = int_to_ptr.vmem [resolvable:$true] %s185
          %191 = dma.hbm_to_vmem [thread:$0]  %s184, 256, %s186, [#allocation6], 64, 64, 4
        $region24: #{tpu_custom_call.1} parent=11 // pred_fallthru
          _
      $region12: #{tpu_custom_call.1} parent=5 // pred_fallthru
        _
      %p192 = scmp.lt.s32.totalorder %s17, 2
      // Predicated region
      $region25: #{tpu_custom_call.1} parent=5 // pred_check
        %p193 = pneg %p192
      $region26: #{tpu_custom_call.1} parent=5 // pred_check_branch
        %195 = sbr.rel (%p193) target = $region28
      $region27: #{tpu_custom_call.1} parent=5 // pred_region
        // Predicated region
        $region29: #{tpu_custom_call.1} parent=27 // pred_check
          %p196 = pneg %p51
        $region30: #{tpu_custom_call.1} parent=27 // pred_check_branch
          %198 = sbr.rel (%p196) target = $region32
        $region31: #{tpu_custom_call.1} parent=27 // pred_region
          %s199 = sand.u32 %s41, 1
          %s200 = scalar_lea.sflag [#allocation3], %s199
          %s201 = sand.u32 %s41, 1
          %s202 = smul.addr %s201, 8
          %s203 = scalar_lea.vmem [#allocation2], %s202
          %205 = vsyncadd %s200, 0
          %s206 = sadd.s32 %s25, %s24
          %s207 = smul.addr %s206, 8
          %s208 = scalar_lea.hbm %s0, %s207
          %s210 = sshll.u32 %s208, 4
          %s211 = int_to_ptr.hbm [resolvable:$true] %s210
          %s212 = sshll.u32 %s203, 4
          %s213 = int_to_ptr.vmem [resolvable:$true] %s212
          %215 = dma.hbm_to_vmem [thread:$0]  %s211, 128, %s213, %s200
        $region32: #{tpu_custom_call.1} parent=27 // pred_fallthru
          _
      $region28: #{tpu_custom_call.1} parent=5 // pred_fallthru
        _
      %p216 = scmp.le.s32.totalorder 1, %s17
      %p217 = scmp.lt.s32.totalorder %s17, 3
      %p218 = pnand %p216, %p217
      %p219 = pneg %p218
      // Predicated region
      $region33: #{tpu_custom_call.1} parent=5 // pred_check
        _
      $region34: #{tpu_custom_call.1} parent=5 // pred_check_branch
        %221 = sbr.rel (%p218) target = $region36
      $region35: #{tpu_custom_call.1} parent=5 // pred_region
        %s222 = ssub.s32 %s17, 1
        %s223 = sand.u32 %s44, 1
        %s224 = scalar_lea.sflag [#allocation3], %s223
        %s225 = sand.u32 %s44, 1
        %s226 = smul.addr %s225, 8
        %s227 = scalar_lea.vmem [#allocation2], %s226
        // Predicated region
        $region37: #{tpu_custom_call.1} parent=35 // pred_check
          %p228 = pneg %p57
        $region38: #{tpu_custom_call.1} parent=35 // pred_check_branch
          %230 = sbr.rel (%p228) target = $region40
        $region39: #{tpu_custom_call.1} parent=35 // pred_region
          %232 = dma.done %s224, 128
        $region40: #{tpu_custom_call.1} parent=35 // pred_fallthru
          _
        // Predicated region
        $region41: #{tpu_custom_call.1} parent=35 // pred_check
          %p233 = pneg %p78
        $region42: #{tpu_custom_call.1} parent=35 // pred_check_branch
          %235 = sbr.rel (%p233) target = $region44
        $region43: #{tpu_custom_call.1} parent=35 // pred_region
          %237 = dma.done [#allocation6], 16
        $region44: #{tpu_custom_call.1} parent=35 // pred_fallthru
          _
        // Predicated region
        $region45: #{tpu_custom_call.1} parent=35 // pred_check
          %p238 = pneg %p120
        $region46: #{tpu_custom_call.1} parent=35 // pred_check_branch
          %240 = sbr.rel (%p238) target = $region48
        $region47: #{tpu_custom_call.1} parent=35 // pred_region
          %242 = dma.done [#allocation6], 256
        $region48: #{tpu_custom_call.1} parent=35 // pred_fallthru
          _
        %s243 = sand.u32 %s44, 1
        %s244 = scalar_lea.sflag [#allocation3], %s243
        %s245 = sand.u32 %s44, 1
        %s246 = smul.addr %s245, 8
        %s247 = scalar_lea.vmem [#allocation2], %s246
        %p248 = pneg %p57
        %p249 = pneg %p54
        %p250 = pneg %p78
        %p251 = pneg %p75
        %p252 = pneg %p99
        %p253 = pneg %p96
        %p254 = pneg %p120
        %p255 = pneg %p117
        %p256 = pneg %p148
        %p257 = pneg %p145
        %s258 = sand.u32 %s135, 1
        %s259 = scalar_lea.sflag [#allocation4], %s258
        %s260 = sand.u32 %s135, 1
        %s261 = smul.addr %s260, 4
        %s262 = scalar_lea.vmem [#allocation8], %s261
        %v264 = vld [vmem:[%s227] sm:$0xff]
        %vm265 = vcmask 261120
        %v266 = vsel %vm265, %v264, 0.0
        %267 = vadd.xlane.f32.xlu0 %v266
        %v268 = vpop.xlane.xlu0 %267
        %v269 = vrcp.pop 32.0
        %v270 = vmul.f32 32.0, %v269
        %v271 = vsub.f32 1.0, %v270
        %v272 = vmul.f32 %v269, %v271
        %v273 = vadd.f32 %v269, %v272
        %vm274 = vweird.f32 %v269
        %v275 = vsel %vm274, %v269, %v273
        %v276 = vmul.f32 %v268, %v275
        %v277 = vsub.f32 %v264, %v276
        %v278 = vmul.f32 %v277, %v277
        %v279 = vsel %vm265, %v278, 0.0
        %280 = vadd.xlane.f32.xlu0 %v279
        %v281 = vpop.xlane.xlu0 %280
        %v282 = vmul.f32 %v281, %v275
        %v283 = vadd.f32 %v282, 1e-06
        %v284 = vrsqrt.pop %v283
        %v285 = vmul.f32 %v284, %v283
        %v286 = vmul.f32 %v285, %v284
        %v287 = vmul.f32 0.5, %v286
        %v288 = vsub.f32 1.5, %v287
        %v289 = vmul.f32 %v284, %v288
        %vm290 = vweird.f32 %v283
        %vm291 = vweird.f32 %v284
        %vm292 = vmor %vm290, %vm291
        %v293 = vsel %vm292, %v284, %v289
        %v294 = vmul.f32 %v277, %v293
        %v295 = vld [vmem:[#allocation5] sm:$0x1]
        %v297 = vperm.slane %v295, 0
        %v299 = vmul.f32 %v294, %v297
        %v300 = vld [vmem:[%s2] sm:$0x1]
        %v302 = vperm.slane %v300, 0
        %v304 = vadd.f32 %v299, %v302
        %v305 = vpack.c.bf16 %v304, %v304
        %v306 = vld [vmem:[#allocation7] sm:$0xf]
        %v307 = vld [vmem:[#allocation7 + $0x4] sm:$0xf]
        %v308 = vld [vmem:[#allocation7 + $0x8] sm:$0xf]
        %v309 = vld [vmem:[#allocation7 + $0xc] sm:$0xf]
        %v314 = vunpack.c.l.b16 %v306
        %v315 = vunpack.c.l.b16 %v307
        %v316 = vunpack.c.l.b16 %v308
        %v317 = vunpack.c.l.b16 %v309
        %v318 = vpack.c.b16 %v315, %v314
        %v319 = vpack.c.b16 %v317, %v316
        %v323 = vsel %vm265, %v305, 0
        %325 = vmatpush.bf16.msra.mxu0 0
        %326 = vmatpush.bf16.msra.mxu0 0
        %327 = vmatpush.bf16.msra.mxu0 0
        %328 = vmatpush.bf16.msra.mxu0 0
        %329 = vmatpush.bf16.msra.mxu0 0
        %330 = vmatpush.bf16.msra.mxu0 0
        %331 = vmatpush.bf16.msra.mxu0 %v319
        %332 = vmatpush.bf16.msra.mxu0 %v318
        %333 = vmatmul.bf16.gmra.mxu0 %v323
        %v334 = vpop.f32.mrf.mxu0
        %v335 = vadd.f32 0.0, %v334
        %v336 = vpop.f32.mrf.mxu0
        %337 = vdwg.mxu0
        %v338 = vpack.c.bf16 %v335, %v335
        %vm339 = vcmask 257024
        %340 = vst.msk [vmem:[%s262] sm:$0xf] %vm339, %v338
        %s341 = sand.u32 %s135, 1
        %s342 = scalar_lea.sflag [#allocation4], %s341
        %s343 = sand.u32 %s135, 1
        %s344 = smul.addr %s343, 4
        %s345 = scalar_lea.vmem [#allocation8], %s344
        // Predicated region
        $region49: #{tpu_custom_call.1} parent=35 // pred_check
          %p346 = pneg %p145
        $region50: #{tpu_custom_call.1} parent=35 // pred_check_branch
          %348 = sbr.rel (%p346) target = $region52
        $region51: #{tpu_custom_call.1} parent=35 // pred_region
          %350 = vsyncadd %s342, 0
          %s351 = sadd.s32 %s27, %s26
          %s352 = smul.addr %s351, 4
          %s353 = scalar_lea.hbm %s4, %s352
          %s355 = sshll.u32 %s345, 4
          %s356 = int_to_ptr.vmem [resolvable:$true] %s355
          %s357 = sshll.u32 %s353, 4
          %s358 = int_to_ptr.hbm [resolvable:$true] %s357
          %360 = dma.vmem_to_hbm [thread:$0]  %s356, 64, %s358, %s342
        $region52: #{tpu_custom_call.1} parent=35 // pred_fallthru
          _
      $region36: #{tpu_custom_call.1} parent=5 // pred_fallthru
        _
      %p361 = scmp.le.s32.totalorder 2, %s17
      // Predicated region
      $region53: #{tpu_custom_call.1} parent=5 // pred_check
        %p362 = pneg %p361
      $region54: #{tpu_custom_call.1} parent=5 // pred_check_branch
        %364 = sbr.rel (%p362) target = $region56
      $region55: #{tpu_custom_call.1} parent=5 // pred_region
        %s365 = ssub.s32 %s17, 2
        // Predicated region
        $region57: #{tpu_custom_call.1} parent=55 // pred_check
          %p366 = pneg %p151
        $region58: #{tpu_custom_call.1} parent=55 // pred_check_branch
          %368 = sbr.rel (%p366) target = $region60
        $region59: #{tpu_custom_call.1} parent=55 // pred_region
          %s369 = sand.u32 %s136, 1
          %s370 = scalar_lea.sflag [#allocation4], %s369
          %s371 = sand.u32 %s136, 1
          %s372 = smul.addr %s371, 4
          %s373 = scalar_lea.vmem [#allocation8], %s372
          %375 = dma.done %s370, 64
        $region60: #{tpu_custom_call.1} parent=55 // pred_fallthru
          _
      $region56: #{tpu_custom_call.1} parent=5 // pred_fallthru
        _
    $region6: #{tpu_custom_call.1} parent=1 // loop_footer
      %s21 = sadd.s32 1, %s17
    $region7: #{tpu_custom_call.1} parent=1 // loop_footer_branch
      %16 = sbr.rel target = $region3
    $region8: #{tpu_custom_call.1} parent=1 // loop_exit
      _
    %376 = vsyncpa [#allocation3], 1
    %s377 = scalar_lea.sflag [#allocation3], 1
    %378 = vsyncpa %s377, 1
    %379 = vsyncpa [#allocation6], 1
    %380 = vsyncpa [#allocation4], 1
    %s381 = scalar_lea.sflag [#allocation4], 1
    %382 = vsyncpa %s381, 1

</llo_original>
